<compile_context>
chip_gen: v6e
topology: v6e:2x2x1
jax: 0.10.0
libtpu: 0.0.40
codegen_flags: <defaults>
</compile_context>

<pallas_src>
import functools

import jax
import jax.numpy as jnp
from jax.experimental import pallas as pl
from jax.experimental.pallas import tpu as pltpu

N_HIDDEN = 512


def _disc_kernel(x_ref, w1_ref, b1_ref, w2_ref, b2_ref, w3_ref, b3_ref, o_ref):
    # x tile: (TB, n_in). Cast to bf16 for the MXU; accumulate in f32.
    x = x_ref[...].astype(jnp.bfloat16)

    # Layer 1: (TB, n_in) @ (n_in, 512) -> f32, + bias, relu (all f32).
    h1 = jnp.dot(x, w1_ref[...], preferred_element_type=jnp.float32) + b1_ref[...]
    h1 = jnp.maximum(h1, 0.0)

    # Layer 2: (TB, 512) @ (512, 512) -> f32, + bias, relu.
    h2 = jnp.dot(h1.astype(jnp.bfloat16), w2_ref[...],
                 preferred_element_type=jnp.float32) + b2_ref[...]
    h2 = jnp.maximum(h2, 0.0)

    # Output head: N=1 matmul replaced by VPU multiply + XLU lane reduction
    # (rides free while the MXU is the saturated unit). b3 is an SMEM scalar.
    s = jnp.sum(h2 * w3_ref[...], axis=-1, keepdims=True) + b3_ref[0]
    o_ref[...] = jnp.clip(s, -50.0, 50.0).astype(o_ref.dtype)


def prepare_params(params, compute_dtype=jnp.bfloat16):
    """One-time parameter prep (hoisted out of the per-call forward path):
    transpose W1/W2 to (in, out), cast matmul weights to bf16, reshape
    biases / W3 to (1, out) f32 rows, b3 as a flat f32 scalar for SMEM."""
    return {
        "w1t": jnp.asarray(params["W_1"]).T.astype(compute_dtype),      # (n_in, 512)
        "w2t": jnp.asarray(params["W_2"]).T.astype(compute_dtype),      # (512, 512)
        "w3_row": jnp.asarray(params["W_3"]).reshape(1, -1).astype(jnp.float32),  # (1, 512)
        "b1": jnp.asarray(params["b_1"]).reshape(1, -1).astype(jnp.float32),      # (1, 512)
        "b2": jnp.asarray(params["b_2"]).reshape(1, -1).astype(jnp.float32),      # (1, 512)
        "b3": jnp.asarray(params["b_3"]).reshape(-1).astype(jnp.float32),         # (1,)
    }


def _round_up(v, m):
    return ((v + m - 1) // m) * m


def _choose_tile(batch, tb_max):
    """Batch tile selection.

    - B <= tb_max and B <= 256: single full-extent tile (always legal).
    - 256 < B <= tb_max: split into >=2 grid steps so v7x's two TensorCores
      both get work under dimension_semantics=("parallel",).
    - B > tb_max: tile by tb_max (multiple of 8)."""
    tb_max = max(8, (tb_max // 8) * 8)
    if batch <= tb_max:
        if batch <= 256:
            return batch
        return min(tb_max, _round_up(pl.cdiv(batch, 2), 8))
    return tb_max


def _vmem_limit_bytes(tb, n_in, n_h):
    """Explicit scoped-VMEM budget (bytes) for the chosen batch tile."""
    f32, bf16, lane = 4, 2, 128
    n_in_p = _round_up(max(n_in, lane), lane)
    n_h_p = _round_up(n_h, lane)
    est = 0
    est += 2 * tb * n_in_p * f32      # x tile, double-buffered
    est += n_in_p * n_h_p * bf16      # W1^T (single-buffered, resident)
    est += n_h_p * n_h_p * bf16       # W2^T (single-buffered, resident)
    est += 3 * 8 * n_h_p * f32        # b1, b2, w3_row (sublane-padded rows)
    est += 2 * tb * lane * f32        # (tb,1) output buffer padded to 128 lanes, x2
    est += 2 * tb * n_h_p * f32       # h1, h2 f32 intermediates
    est += tb * n_h_p * bf16          # bf16 copy of h1 feeding the 2nd matmul
    est += 4 * 1024 * 1024            # compiler-internal scratch / slack
    # Floor at the v6e/v7x scoped default (raises v5e's 16 MiB default),
    # cap below v7x's 64 MiB per-TC physical VMEM.
    return int(min(56 * 1024 * 1024, max(32 * 1024 * 1024, est)))


@functools.partial(jax.jit, static_argnames=("tb_max",))
def discriminator_forward(x, prep, *, tb_max=2048):
    """x: (B, n_input) float32 (or bf16). prep: output of prepare_params()."""
    B, n_in = x.shape
    n_h = prep["w1t"].shape[1]

    tb = _choose_tile(B, tb_max)
    grid = (pl.cdiv(B, tb),)
    vmem_bytes = _vmem_limit_bytes(tb, n_in, n_h)

    # Resident operands: constant index_map -> fetched once; single-buffer them.
    resident = pl.Buffered(1)

    flops = 2 * B * (n_in * n_h + n_h * n_h + n_h)
    bytes_accessed = (B * n_in * 4                       # x
                      + n_in * n_h * 2 + n_h * n_h * 2   # bf16 weights
                      + (3 * n_h + 1) * 4                # biases + w3 row
                      + B * 4)                           # output

    return pl.pallas_call(
        _disc_kernel,
        out_shape=jax.ShapeDtypeStruct((B, 1), jnp.float32),
        grid=grid,
        in_specs=[
            pl.BlockSpec((tb, n_in), lambda i: (i, 0)),       # x: blocked on batch
            pl.BlockSpec((n_in, n_h), lambda i: (0, 0),
                         pipeline_mode=resident),             # W1^T: resident
            pl.BlockSpec((1, n_h), lambda i: (0, 0),
                         pipeline_mode=resident),             # b1:   resident
            pl.BlockSpec((n_h, n_h), lambda i: (0, 0),
                         pipeline_mode=resident),             # W2^T: resident
            pl.BlockSpec((1, n_h), lambda i: (0, 0),
                         pipeline_mode=resident),             # b2:   resident
            pl.BlockSpec((1, n_h), lambda i: (0, 0),
                         pipeline_mode=resident),             # W3 row: resident
            pl.BlockSpec(memory_space=pltpu.MemorySpace.SMEM),  # b3: SMEM scalar
        ],
        out_specs=pl.BlockSpec((tb, 1), lambda i: (i, 0)),
        compiler_params=pltpu.CompilerParams(
            dimension_semantics=("parallel",),
            vmem_limit_bytes=vmem_bytes),
        cost_estimate=pl.CostEstimate(flops=int(flops), transcendentals=0,
                                      bytes_accessed=int(bytes_accessed)),
    )(x, prep["w1t"], prep["b1"], prep["w2t"], prep["b2"],
      prep["w3_row"], prep["b3"])


def init_params(key, n_input):
    """Deterministic synthetic params matching the PyTorch __init__ shapes
    (normal, std=0.1), PyTorch (out, in) convention."""
    ks = jax.random.split(key, 6)
    std = 0.1
    return {
        "W_1": std * jax.random.normal(ks[0], (N_HIDDEN, n_input), jnp.float32),
        "b_1": std * jax.random.normal(ks[1], (N_HIDDEN,), jnp.float32),
        "W_2": std * jax.random.normal(ks[2], (N_HIDDEN, N_HIDDEN), jnp.float32),
        "b_2": std * jax.random.normal(ks[3], (N_HIDDEN,), jnp.float32),
        "W_3": std * jax.random.normal(ks[4], (1, N_HIDDEN), jnp.float32),
        "b_3": std * jax.random.normal(ks[5], (1,), jnp.float32),
    }


def _reference_forward_f32(x, p):
    h = jnp.maximum(x @ p["W_1"].T + p["b_1"], 0.0)
    h = jnp.maximum(h @ p["W_2"].T + p["b_2"], 0.0)
    s = h @ p["W_3"].T + p["b_3"]
    return jnp.clip(s, -50.0, 50.0)


def _reference_forward_bf16(x, p):
    # Mirrors the kernel's numerics: bf16 MXU operands, f32 accumulation,
    # f32 bias/relu/head.
    bf = jnp.bfloat16
    h = jnp.dot(x.astype(bf), p["W_1"].T.astype(bf),
                preferred_element_type=jnp.float32) + p["b_1"]
    h = jnp.maximum(h, 0.0)
    h = jnp.dot(h.astype(bf), p["W_2"].T.astype(bf),
                preferred_element_type=jnp.float32) + p["b_2"]
    h = jnp.maximum(h, 0.0)
    s = jnp.sum(h * p["W_3"].reshape(1, -1), axis=-1, keepdims=True) + p["b_3"]
    return jnp.clip(s, -50.0, 50.0)


if __name__ == "__main__":
    key = jax.random.PRNGKey(0)
    k_x, k_x2, k_x3, k_p = jax.random.split(key, 4)

    n_input = 32
    params = init_params(k_p, n_input)
    prep = prepare_params(params)

    def check(x, out):
        assert out.shape == (x.shape[0], 1), out.shape
        assert jnp.allclose(out, _reference_forward_bf16(x, params),
                            atol=2e-3, rtol=2e-3)
        assert jnp.allclose(out, _reference_forward_f32(x, params),
                            atol=5e-2, rtol=5e-2)

    # Small batch (single grid step, full-extent tile).
    batch = 8
    x = jax.random.normal(k_x, (batch, n_input), jnp.float32)
    out = jax.block_until_ready(discriminator_forward(x, prep))
    check(x, out)

    # Ragged multi-step batch grid (tb_max=64 -> 4 grid steps, last ragged).
    batch2 = 200
    x2 = jax.random.normal(k_x2, (batch2, n_input), jnp.float32)
    out2 = jax.block_until_ready(discriminator_forward(x2, prep, tb_max=64))
    check(x2, out2)

    # B > 256 with default tb_max: exercises the forced >=2-step split
    # (tb=200, grid=(2,)) that engages both TensorCores on v7x.
    batch3 = 400
    x3 = jax.random.normal(k_x3, (batch3, n_input), jnp.float32)
    out3 = jax.block_until_ready(discriminator_forward(x3, prep))
    check(x3, out3)

    print("KERNEL_OK")
</pallas_src>

<mosaic_0001>
module attributes {stable_mosaic.version = 11 : i64} {
  func.func @_disc_kernel(%arg0: i32, %arg1: memref<8x32xf32, #tpu.memory_space<vmem>>, %arg2: memref<32x512xbf16, #tpu.memory_space<vmem>>, %arg3: memref<1x512xf32, #tpu.memory_space<vmem>>, %arg4: memref<512x512xbf16, #tpu.memory_space<vmem>>, %arg5: memref<1x512xf32, #tpu.memory_space<vmem>>, %arg6: memref<1x512xf32, #tpu.memory_space<vmem>>, %arg7: memref<1xf32, #tpu.memory_space<smem>>, %arg8: memref<8x1xf32, #tpu.memory_space<vmem>>) attributes {dimension_semantics = [#tpu.dimension_semantics<parallel>], iteration_bounds = array<i64: 1>, scalar_prefetch = 0 : i64, scratch_operands = 0 : i64, tpu.core_type = #tpu.core_type<tc>, window_params = [{transform_indices = @transform_0, window_bounds = array<i64: 8, 32>}, {pipeline_mode = #tpu.pipeline_mode<synchronous>, transform_indices = @transform_1, window_bounds = array<i64: 32, 512>}, {pipeline_mode = #tpu.pipeline_mode<synchronous>, transform_indices = @transform_2, window_bounds = array<i64: 1, 512>}, {pipeline_mode = #tpu.pipeline_mode<synchronous>, transform_indices = @transform_3, window_bounds = array<i64: 512, 512>}, {pipeline_mode = #tpu.pipeline_mode<synchronous>, transform_indices = @transform_4, window_bounds = array<i64: 1, 512>}, {pipeline_mode = #tpu.pipeline_mode<synchronous>, transform_indices = @transform_5, window_bounds = array<i64: 1, 512>}, {transform_indices = @transform_6, window_bounds = array<i64: 1>}, {transform_indices = @transform_7, window_bounds = array<i64: 8, 1>}]} {
    %c0 = arith.constant 0 : index
    %c0_0 = arith.constant 0 : index
    %0 = vector.load %arg1[%c0, %c0_0] : memref<8x32xf32, #tpu.memory_space<vmem>>, vector<8x32xf32>
    %1 = arith.truncf %0 : vector<8x32xf32> to vector<8x32xbf16>
    %c0_1 = arith.constant 0 : index
    %c0_2 = arith.constant 0 : index
    %2 = vector.load %arg2[%c0_1, %c0_2] : memref<32x512xbf16, #tpu.memory_space<vmem>>, vector<32x512xbf16>
    %cst = arith.constant dense<0.000000e+00> : vector<8x512xf32>
    %3 = tpu.matmul %1, %2, %cst {dimension_numbers = #tpu.dot_dimension_numbers<[1], [0], [0], [1], [0, 0, 1, 1], [], []>} : vector<8x32xbf16>, vector<32x512xbf16>, vector<8x512xf32> -> vector<8x512xf32>
    %c0_3 = arith.constant 0 : index
    %c0_4 = arith.constant 0 : index
    %4 = vector.load %arg3[%c0_3, %c0_4] : memref<1x512xf32, #tpu.memory_space<vmem>>, vector<1x512xf32>
    %5 = vector.broadcast %4 : vector<1x512xf32> to vector<8x512xf32>
    %6 = arith.addf %3, %5 : vector<8x512xf32>
    %cst_5 = arith.constant 0.000000e+00 : f32
    %7 = vector.broadcast %cst_5 : f32 to vector<8x512xf32>
    %8 = arith.maximumf %6, %7 : vector<8x512xf32>
    %9 = arith.truncf %8 : vector<8x512xf32> to vector<8x512xbf16>
    %c0_6 = arith.constant 0 : index
    %c0_7 = arith.constant 0 : index
    %10 = vector.load %arg4[%c0_6, %c0_7] : memref<512x512xbf16, #tpu.memory_space<vmem>>, vector<512x512xbf16>
    %cst_8 = arith.constant dense<0.000000e+00> : vector<8x512xf32>
    %11 = tpu.matmul %9, %10, %cst_8 {dimension_numbers = #tpu.dot_dimension_numbers<[1], [0], [0], [1], [0, 0, 1, 1], [], []>} : vector<8x512xbf16>, vector<512x512xbf16>, vector<8x512xf32> -> vector<8x512xf32>
    %c0_9 = arith.constant 0 : index
    %c0_10 = arith.constant 0 : index
    %12 = vector.load %arg5[%c0_9, %c0_10] : memref<1x512xf32, #tpu.memory_space<vmem>>, vector<1x512xf32>
    %13 = vector.broadcast %12 : vector<1x512xf32> to vector<8x512xf32>
    %14 = arith.addf %11, %13 : vector<8x512xf32>
    %cst_11 = arith.constant 0.000000e+00 : f32
    %15 = vector.broadcast %cst_11 : f32 to vector<8x512xf32>
    %16 = arith.maximumf %14, %15 : vector<8x512xf32>
    %c0_12 = arith.constant 0 : index
    %c0_13 = arith.constant 0 : index
    %17 = vector.load %arg6[%c0_12, %c0_13] : memref<1x512xf32, #tpu.memory_space<vmem>>, vector<1x512xf32>
    %18 = vector.broadcast %17 : vector<1x512xf32> to vector<8x512xf32>
    %19 = arith.mulf %16, %18 : vector<8x512xf32>
    %cst_14 = arith.constant dense<0.000000e+00> : vector<8xf32>
    %20 = vector.multi_reduction <add>, %19, %cst_14 [1] : vector<8x512xf32> to vector<8xf32>
    %21 = vector.shape_cast %20 : vector<8xf32> to vector<8x1xf32>
    %c0_15 = arith.constant 0 : index
    %22 = memref.load %arg7[%c0_15] : memref<1xf32, #tpu.memory_space<smem>>
    %23 = vector.broadcast %22 : f32 to vector<8x1xf32>
    %24 = arith.addf %21, %23 : vector<8x1xf32>
    %cst_16 = arith.constant -5.000000e+01 : f32
    %cst_17 = arith.constant 5.000000e+01 : f32
    %25 = vector.broadcast %cst_16 : f32 to vector<8x1xf32>
    %26 = arith.maximumf %25, %24 : vector<8x1xf32>
    %27 = vector.broadcast %cst_17 : f32 to vector<8x1xf32>
    %28 = arith.minimumf %27, %26 : vector<8x1xf32>
    %c0_18 = arith.constant 0 : index
    %c0_19 = arith.constant 0 : index
    %29 = vector.load %arg8[%c0_18, %c0_19] : memref<8x1xf32, #tpu.memory_space<vmem>>, vector<8x1xf32>
    tpu.vector_store %arg8[%c0_18, %c0_19], %28 {strides = array<i32>} : memref<8x1xf32, #tpu.memory_space<vmem>>, vector<8x1xf32>,
    return
  }
  func.func @transform_0(%arg0: i32) -> (i32, i32) {
    %c0_i32 = arith.constant 0 : i32
    %c0_i32_0 = arith.constant 0 : i32
    return %arg0, %c0_i32 : i32, i32
  }
  func.func @transform_1(%arg0: i32) -> (i32, i32) {
    %c0_i32 = arith.constant 0 : i32
    %c0_i32_0 = arith.constant 0 : i32
    %c0_i32_1 = arith.constant 0 : i32
    return %c0_i32, %c0_i32_0 : i32, i32
  }
  func.func @transform_2(%arg0: i32) -> (i32, i32) {
    %c0_i32 = arith.constant 0 : i32
    %c0_i32_0 = arith.constant 0 : i32
    %c0_i32_1 = arith.constant 0 : i32
    return %c0_i32, %c0_i32_0 : i32, i32
  }
  func.func @transform_3(%arg0: i32) -> (i32, i32) {
    %c0_i32 = arith.constant 0 : i32
    %c0_i32_0 = arith.constant 0 : i32
    %c0_i32_1 = arith.constant 0 : i32
    return %c0_i32, %c0_i32_0 : i32, i32
  }
  func.func @transform_4(%arg0: i32) -> (i32, i32) {
    %c0_i32 = arith.constant 0 : i32
    %c0_i32_0 = arith.constant 0 : i32
    %c0_i32_1 = arith.constant 0 : i32
    return %c0_i32, %c0_i32_0 : i32, i32
  }
  func.func @transform_5(%arg0: i32) -> (i32, i32) {
    %c0_i32 = arith.constant 0 : i32
    %c0_i32_0 = arith.constant 0 : i32
    %c0_i32_1 = arith.constant 0 : i32
    return %c0_i32, %c0_i32_0 : i32, i32
  }
  func.func @transform_6(%arg0: i32) -> i32 {
    %c0_i32 = arith.constant 0 : i32
    %c0_i32_0 = arith.constant 0 : i32
    return %c0_i32 : i32
  }
  func.func @transform_7(%arg0: i32) -> (i32, i32) {
    %c0_i32 = arith.constant 0 : i32
    %c0_i32_0 = arith.constant 0 : i32
    return %arg0, %c0_i32 : i32, i32
  }
}

</mosaic_0001>

<llo_original>
// kernel: discriminator_forward.1
$region0: #{discriminator_forward.1}
  #allocation0 [shape = 'u32[]', space=smem, size = 0x4, offset = 0x4, fixed_abs, tag = 'smem constant byte address 0x4 - core index']
  #allocation1 [shape = 'u32[144,128]{1,0:T(1,128)}', space=vmem, size = 0x12000, scoped, tag = 'internal scratch']
  #allocation2 [shape = 'f32[1]{0:T(128)S(6)}', space=smem, size = 0x200, scoped, tag = 'scoped memory for discriminator_forward.1']
  %s0 = inlined_call_operand.hbm [shape: f32[8,32], index: 0, kind: input, shape index: {}]
  %s1 = inlined_call_operand.hbm [shape: bf16[32,512], index: 1, kind: input, shape index: {}]
  %s2 = inlined_call_operand.hbm [shape: f32[1,512], index: 2, kind: input, shape index: {}]
  %s3 = inlined_call_operand.hbm [shape: bf16[512,512], index: 3, kind: input, shape index: {}]
  %s4 = inlined_call_operand.vmem [shape: f32[1,512], index: 4, kind: input, shape index: {}]
  %s5 = inlined_call_operand.vmem [shape: f32[1,512], index: 5, kind: input, shape index: {}]
  %s6 = inlined_call_operand.<no memory space> [shape: f32[1], index: 6, kind: input, shape index: {}]
  %s7 = inlined_call_operand.vmem [shape: f32[8,1], index: 7, kind: output, shape index: {}]
  %s8 = sld [smem:[#allocation0]]
  $region54: #{discriminator_forward.1} parent=0
    _
  %s10 = ssub.s32 1, %s8
  %s11 = scalar_select 0, %s10, %s8
  %12 = sst [smem:[#allocation2]] %s6
  $region1: #{discriminator_forward.1} parent=0
    #allocation3 [shape = 'u8[4096]{0}', space=vmem, size = 0x1000, scoped, tag = 'input window, operand 0, single buffered']
    #allocation4 [shape = 's32[1]{0}', space=sflag, size = 0x4, scoped, tag = 'scoped memory for discriminator_forward.1']
    #allocation5 [shape = 'u8[32768]{0}', space=vmem, size = 0x8000, scoped, tag = 'input window, operand 1, single buffered']
    #allocation6 [shape = 's32[1]{0}', space=sflag, size = 0x4, scoped, tag = 'scoped memory for discriminator_forward.1']
    #allocation7 [shape = 'u8[2048]{0}', space=vmem, size = 0x800, scoped, tag = 'input window, operand 2, single buffered']
    #allocation8 [shape = 'u8[524288]{0}', space=vmem, size = 0x80000, scoped, tag = 'input window, operand 3, single buffered']
    #allocation9 [shape = 's32[1]{0}', space=sflag, size = 0x4, scoped, tag = 'scoped memory for discriminator_forward.1']
    %13 = vsyncpa [#allocation4], 0
    %14 = vsyncpa [#allocation6], 0
    %15 = vsyncpa [#allocation9], 0
    // Predicated region
    $region2: #{discriminator_forward.1} parent=1 // pred_check
      _
    $region3: #{discriminator_forward.1} parent=1 // pred_check_branch
      %17 = sbr.rel (0) target = $region5
    $region4: #{discriminator_forward.1} parent=1 // pred_region
      %s19 = ssub.s32 128, 128
      %20 = vsyncadd [#allocation4], %s19
      %s22 = sshll.u32 [#allocation3], 4
      %s23 = int_to_ptr.vmem [resolvable:$true] %s22
      %25 = dma.hbm_to_vmem [thread:$0]  %s0, 128, %s23, [#allocation4]
    $region5: #{discriminator_forward.1} parent=1 // pred_fallthru
      _
    // Predicated region
    $region6: #{discriminator_forward.1} parent=1 // pred_check
      _
    $region7: #{discriminator_forward.1} parent=1 // pred_check_branch
      %27 = sbr.rel (0) target = $region9
    $region8: #{discriminator_forward.1} parent=1 // pred_region
      %s29 = ssub.s32 1024, 1024
      %30 = vsyncadd [#allocation6], %s29
      %s31 = sshll.u32 [#allocation5], 4
      %s32 = int_to_ptr.vmem [resolvable:$true] %s31
      %37 = dma.hbm_to_vmem [thread:$0]  %s1, 1024, %s32, [#allocation6], 256, 256, 16
    $region9: #{discriminator_forward.1} parent=1 // pred_fallthru
      _
    // Predicated region
    $region10: #{discriminator_forward.1} parent=1 // pred_check
      _
    $region11: #{discriminator_forward.1} parent=1 // pred_check_branch
      %39 = sbr.rel (0) target = $region13
    $region12: #{discriminator_forward.1} parent=1 // pred_region
      %s41 = ssub.s32 64, 64
      %42 = vsyncadd [#allocation6], %s41
      %s44 = sshll.u32 [#allocation7], 4
      %s45 = int_to_ptr.vmem [resolvable:$true] %s44
      %47 = dma.hbm_to_vmem [thread:$0]  %s2, 64, %s45, [#allocation6]
    $region13: #{discriminator_forward.1} parent=1 // pred_fallthru
      _
    // Predicated region
    $region14: #{discriminator_forward.1} parent=1 // pred_check
      _
    $region15: #{discriminator_forward.1} parent=1 // pred_check_branch
      %49 = sbr.rel (0) target = $region17
    $region16: #{discriminator_forward.1} parent=1 // pred_region
      %s51 = ssub.s32 16384, 16384
      %52 = vsyncadd [#allocation9], %s51
      %s53 = sshll.u32 [#allocation8], 4
      %s54 = int_to_ptr.vmem [resolvable:$true] %s53
      %59 = dma.hbm_to_vmem [thread:$0]  %s3, 16384, %s54, [#allocation9], 256, 256, 16
    $region17: #{discriminator_forward.1} parent=1 // pred_fallthru
      _
    // Predicated region
    $region18: #{discriminator_forward.1} parent=1 // pred_check
      _
    $region19: #{discriminator_forward.1} parent=1 // pred_check_branch
      %61 = sbr.rel (0) target = $region21
    $region20: #{discriminator_forward.1} parent=1 // pred_region
      _
    $region21: #{discriminator_forward.1} parent=1 // pred_fallthru
      _
    // Predicated region
    $region22: #{discriminator_forward.1} parent=1 // pred_check
      _
    $region23: #{discriminator_forward.1} parent=1 // pred_check_branch
      %63 = sbr.rel (0) target = $region25
    $region24: #{discriminator_forward.1} parent=1 // pred_region
      _
    $region25: #{discriminator_forward.1} parent=1 // pred_fallthru
      _
    // Predicated region
    $region26: #{discriminator_forward.1} parent=1 // pred_check
      _
    $region27: #{discriminator_forward.1} parent=1 // pred_check_branch
      %65 = sbr.rel (0) target = $region29
    $region28: #{discriminator_forward.1} parent=1 // pred_region
      _
    $region29: #{discriminator_forward.1} parent=1 // pred_fallthru
      _
    // Predicated region
    $region30: #{discriminator_forward.1} parent=1 // pred_check
      _
    $region31: #{discriminator_forward.1} parent=1 // pred_check_branch
      %67 = sbr.rel (0) target = $region33
    $region32: #{discriminator_forward.1} parent=1 // pred_region
      %68 = dma.done [#allocation4], 128
    $region33: #{discriminator_forward.1} parent=1 // pred_fallthru
      _
    // Predicated region
    $region34: #{discriminator_forward.1} parent=1 // pred_check
      _
    $region35: #{discriminator_forward.1} parent=1 // pred_check_branch
      %70 = sbr.rel (0) target = $region37
    $region36: #{discriminator_forward.1} parent=1 // pred_region
      %71 = dma.done [#allocation6], 1024
    $region37: #{discriminator_forward.1} parent=1 // pred_fallthru
      _
    // Predicated region
    $region38: #{discriminator_forward.1} parent=1 // pred_check
      _
    $region39: #{discriminator_forward.1} parent=1 // pred_check_branch
      %73 = sbr.rel (0) target = $region41
    $region40: #{discriminator_forward.1} parent=1 // pred_region
      %74 = dma.done [#allocation6], 64
    $region41: #{discriminator_forward.1} parent=1 // pred_fallthru
      _
    // Predicated region
    $region42: #{discriminator_forward.1} parent=1 // pred_check
      _
    $region43: #{discriminator_forward.1} parent=1 // pred_check_branch
      %76 = sbr.rel (0) target = $region45
    $region44: #{discriminator_forward.1} parent=1 // pred_region
      %77 = dma.done [#allocation9], 16384
    $region45: #{discriminator_forward.1} parent=1 // pred_fallthru
      _
    %v79 = vld [vmem:[#allocation3] sm:$0xff]
    %v80 = vpack.c.bf16 %v79, %v79
    %v81 = vld [vmem:[#allocation5] sm:$0xff]
    %v82 = vld [vmem:[#allocation5 + $0x8] sm:$0xff]
    %v83 = vld [vmem:[#allocation5 + $0x10] sm:$0xff]
    %v84 = vld [vmem:[#allocation5 + $0x18] sm:$0xff]
    %v85 = vld [vmem:[#allocation5 + $0x20] sm:$0xff]
    %v86 = vld [vmem:[#allocation5 + $0x28] sm:$0xff]
    %v87 = vld [vmem:[#allocation5 + $0x30] sm:$0xff]
    %v88 = vld [vmem:[#allocation5 + $0x38] sm:$0xff]
    %v89 = vld [vmem:[#allocation7] sm:$0xf]
    %v91 = vlaneseq
    %v92 = vshrl.u32 %v91, 7
    %v93 = vsub.s32 0, %v92
    %v94 = vrot.slane %v89, %v93
    %v95 = vlaneseq
    %v96 = vshrl.u32 %v95, 7
    %v97 = vsub.s32 1, %v96
    %v98 = vrot.slane %v89, %v97
    %v99 = vlaneseq
    %v100 = vshrl.u32 %v99, 7
    %v101 = vsub.s32 2, %v100
    %v102 = vrot.slane %v89, %v101
    %v103 = vlaneseq
    %v104 = vshrl.u32 %v103, 7
    %v105 = vsub.s32 3, %v104
    %v106 = vrot.slane %v89, %v105
    %v119 = vunpack.c.l.b16 %v81
    %v120 = vunpack.c.h.b16 %v81
    %v121 = vunpack.c.l.b16 %v82
    %v122 = vunpack.c.h.b16 %v82
    %v123 = vunpack.c.l.b16 %v83
    %v124 = vunpack.c.h.b16 %v83
    %v125 = vunpack.c.l.b16 %v84
    %v126 = vunpack.c.h.b16 %v84
    %v127 = vunpack.c.l.b16 %v85
    %v128 = vunpack.c.h.b16 %v85
    %v129 = vunpack.c.l.b16 %v86
    %v130 = vunpack.c.h.b16 %v86
    %v131 = vunpack.c.l.b16 %v87
    %v132 = vunpack.c.h.b16 %v87
    %v133 = vunpack.c.l.b16 %v88
    %v134 = vunpack.c.h.b16 %v88
    %v135 = vpack.c.b16 %v123, %v119
    %v136 = vpack.c.b16 %v124, %v120
    %v137 = vpack.c.b16 %v125, %v121
    %v138 = vpack.c.b16 %v126, %v122
    %v139 = vpack.c.b16 %v131, %v127
    %v140 = vpack.c.b16 %v132, %v128
    %v141 = vpack.c.b16 %v133, %v129
    %v142 = vpack.c.b16 %v134, %v130
    %vm151 = vcmask 261120
    %v153 = vsel %vm151, %v80, 0
    %155 = vmatprep.subr.bf16.mxu0 0
    %156 = vmatpush1.bf16.msra.mxu0 0
    %157 = vmatprep.subr.bf16.mxu0 0
    %158 = vmatpush1.bf16.msra.mxu0 0
    %159 = vmatprep.subr.bf16.mxu0 0
    %160 = vmatpush1.bf16.msra.mxu0 0
    %161 = vmatprep.subr.bf16.mxu0 0
    %162 = vmatpush1.bf16.msra.mxu0 0
    %163 = vmatprep.subr.bf16.mxu0 0
    %164 = vmatpush1.bf16.msra.mxu0 0
    %165 = vmatprep.subr.bf16.mxu0 0
    %166 = vmatpush1.bf16.msra.mxu0 0
    %167 = vmatprep.subr.bf16.mxu0 %v140
    %168 = vmatpush1.bf16.msra.mxu0 %v139
    %169 = vmatprep.subr.bf16.mxu0 %v136
    %170 = vmatpush1.bf16.msra.mxu0 %v135
    %171 = vmatprep.subr.bf16.mxu0 0
    %172 = vmatpush2.bf16.msra.mxu0 0
    %173 = vmatprep.subr.bf16.mxu0 0
    %174 = vmatpush2.bf16.msra.mxu0 0
    %175 = vmatprep.subr.bf16.mxu0 0
    %176 = vmatpush2.bf16.msra.mxu0 0
    %177 = vmatprep.subr.bf16.mxu0 0
    %178 = vmatpush2.bf16.msra.mxu0 0
    %179 = vmatprep.subr.bf16.mxu0 0
    %180 = vmatpush2.bf16.msra.mxu0 0
    %181 = vmatprep.subr.bf16.mxu0 0
    %182 = vmatpush2.bf16.msra.mxu0 0
    %183 = vmatprep.subr.bf16.mxu0 0
    %184 = vmatpush2.bf16.msra.mxu0 0
    %185 = vmatprep.subr.bf16.mxu0 0
    %186 = vmatpush2.bf16.msra.mxu0 0
    %187 = vmatprep.mubr.bf16.mxu0 0
    %188 = vmatmul.mubr.bf16.gmra.mxu0 %v153
    %v189 = vpop.f32.mrf.mxu0
    %v190 = vadd.f32 %v94, %v189
    %v191 = vpop.f32.mrf.mxu0
    %v192 = vadd.f32 %v98, %v191
    %v193 = vpop.f32.mrf.mxu0
    %v194 = vpop.f32.mrf.mxu0
    %195 = vdwg.mxu0
    %196 = vmatprep.subr.bf16.mxu0 0
    %197 = vmatpush1.bf16.msra.mxu0 0
    %198 = vmatprep.subr.bf16.mxu0 0
    %199 = vmatpush1.bf16.msra.mxu0 0
    %200 = vmatprep.subr.bf16.mxu0 0
    %201 = vmatpush1.bf16.msra.mxu0 0
    %202 = vmatprep.subr.bf16.mxu0 0
    %203 = vmatpush1.bf16.msra.mxu0 0
    %204 = vmatprep.subr.bf16.mxu0 0
    %205 = vmatpush1.bf16.msra.mxu0 0
    %206 = vmatprep.subr.bf16.mxu0 0
    %207 = vmatpush1.bf16.msra.mxu0 0
    %208 = vmatprep.subr.bf16.mxu0 %v142
    %209 = vmatpush1.bf16.msra.mxu0 %v141
    %210 = vmatprep.subr.bf16.mxu0 %v138
    %211 = vmatpush1.bf16.msra.mxu0 %v137
    %212 = vmatprep.subr.bf16.mxu0 0
    %213 = vmatpush2.bf16.msra.mxu0 0
    %214 = vmatprep.subr.bf16.mxu0 0
    %215 = vmatpush2.bf16.msra.mxu0 0
    %216 = vmatprep.subr.bf16.mxu0 0
    %217 = vmatpush2.bf16.msra.mxu0 0
    %218 = vmatprep.subr.bf16.mxu0 0
    %219 = vmatpush2.bf16.msra.mxu0 0
    %220 = vmatprep.subr.bf16.mxu0 0
    %221 = vmatpush2.bf16.msra.mxu0 0
    %222 = vmatprep.subr.bf16.mxu0 0
    %223 = vmatpush2.bf16.msra.mxu0 0
    %224 = vmatprep.subr.bf16.mxu0 0
    %225 = vmatpush2.bf16.msra.mxu0 0
    %226 = vmatprep.subr.bf16.mxu0 0
    %227 = vmatpush2.bf16.msra.mxu0 0
    %228 = vmatprep.mubr.bf16.mxu0 0
    %229 = vmatmul.mubr.bf16.gmra.mxu0 %v153
    %v230 = vpop.f32.mrf.mxu0
    %v231 = vadd.f32 %v102, %v230
    %v232 = vpop.f32.mrf.mxu0
    %v233 = vadd.f32 %v106, %v232
    %v234 = vpop.f32.mrf.mxu0
    %v235 = vpop.f32.mrf.mxu0
    %236 = vdwg.mxu0
    %v237 = vmax.f32 %v190, 0.0
    %v238 = vmax.f32 %v192, 0.0
    %v239 = vmax.f32 %v231, 0.0
    %v240 = vmax.f32 %v233, 0.0
    %v241 = vpack.c.bf16 %v237, %v237
    %v242 = vpack.c.bf16 %v238, %v238
    %v243 = vpack.c.bf16 %v239, %v239
    %v244 = vpack.c.bf16 %v240, %v240
    %v245 = vld [vmem:[#allocation8] sm:$0xff]
    %v246 = vld [vmem:[#allocation8 + $0x8] sm:$0xff]
    %v247 = vld [vmem:[#allocation8 + $0x10] sm:$0xff]
    %v248 = vld [vmem:[#allocation8 + $0x18] sm:$0xff]
    %v249 = vld [vmem:[#allocation8 + $0x20] sm:$0xff]
    %v250 = vld [vmem:[#allocation8 + $0x28] sm:$0xff]
    %v251 = vld [vmem:[#allocation8 + $0x30] sm:$0xff]
    %v252 = vld [vmem:[#allocation8 + $0x38] sm:$0xff]
    %v253 = vld [vmem:[#allocation8 + $0x40] sm:$0xff]
    %v254 = vld [vmem:[#allocation8 + $0x48] sm:$0xff]
    %v255 = vld [vmem:[#allocation8 + $0x50] sm:$0xff]
    %v256 = vld [vmem:[#allocation8 + $0x58] sm:$0xff]
    %v257 = vld [vmem:[#allocation8 + $0x60] sm:$0xff]
    %v258 = vld [vmem:[#allocation8 + $0x68] sm:$0xff]
    %v259 = vld [vmem:[#allocation8 + $0x70] sm:$0xff]
    %v260 = vld [vmem:[#allocation8 + $0x78] sm:$0xff]
    %v261 = vld [vmem:[#allocation8 + $0x80] sm:$0xff]
    %v262 = vld [vmem:[#allocation8 + $0x88] sm:$0xff]
    %v263 = vld [vmem:[#allocation8 + $0x90] sm:$0xff]
    %v264 = vld [vmem:[#allocation8 + $0x98] sm:$0xff]
    %v265 = vld [vmem:[#allocation8 + $0xa0] sm:$0xff]
    %v266 = vld [vmem:[#allocation8 + $0xa8] sm:$0xff]
    %v267 = vld [vmem:[#allocation8 + $0xb0] sm:$0xff]
    %v268 = vld [vmem:[#allocation8 + $0xb8] sm:$0xff]
    %v269 = vld [vmem:[#allocation8 + $0xc0] sm:$0xff]
    %v270 = vld [vmem:[#allocation8 + $0xc8] sm:$0xff]
    %v271 = vld [vmem:[#allocation8 + $0xd0] sm:$0xff]
    %v272 = vld [vmem:[#allocation8 + $0xd8] sm:$0xff]
    %v273 = vld [vmem:[#allocation8 + $0xe0] sm:$0xff]
    %v274 = vld [vmem:[#allocation8 + $0xe8] sm:$0xff]
    %v275 = vld [vmem:[#allocation8 + $0xf0] sm:$0xff]
    %v276 = vld [vmem:[#allocation8 + $0xf8] sm:$0xff]
    %v277 = vld [vmem:[#allocation8 + $0x100] sm:$0xff]
    %v278 = vld [vmem:[#allocation8 + $0x108] sm:$0xff]
    %v279 = vld [vmem:[#allocation8 + $0x110] sm:$0xff]
    %v280 = vld [vmem:[#allocation8 + $0x118] sm:$0xff]
    %v281 = vld [vmem:[#allocation8 + $0x120] sm:$0xff]
    %v282 = vld [vmem:[#allocation8 + $0x128] sm:$0xff]
    %v283 = vld [vmem:[#allocation8 + $0x130] sm:$0xff]
    %v284 = vld [vmem:[#allocation8 + $0x138] sm:$0xff]
    %v285 = vld [vmem:[#allocation8 + $0x140] sm:$0xff]
    %v286 = vld [vmem:[#allocation8 + $0x148] sm:$0xff]
    %v287 = vld [vmem:[#allocation8 + $0x150] sm:$0xff]
    %v288 = vld [vmem:[#allocation8 + $0x158] sm:$0xff]
    %v289 = vld [vmem:[#allocation8 + $0x160] sm:$0xff]
    %v290 = vld [vmem:[#allocation8 + $0x168] sm:$0xff]
    %v291 = vld [vmem:[#allocation8 + $0x170] sm:$0xff]
    %v292 = vld [vmem:[#allocation8 + $0x178] sm:$0xff]
    %v293 = vld [vmem:[#allocation8 + $0x180] sm:$0xff]
    %v294 = vld [vmem:[#allocation8 + $0x188] sm:$0xff]
    %v295 = vld [vmem:[#allocation8 + $0x190] sm:$0xff]
    %v296 = vld [vmem:[#allocation8 + $0x198] sm:$0xff]
    %v297 = vld [vmem:[#allocation8 + $0x1a0] sm:$0xff]
    %v298 = vld [vmem:[#allocation8 + $0x1a8] sm:$0xff]
    %v299 = vld [vmem:[#allocation8 + $0x1b0] sm:$0xff]
    %v300 = vld [vmem:[#allocation8 + $0x1b8] sm:$0xff]
    %v301 = vld [vmem:[#allocation8 + $0x1c0] sm:$0xff]
    %v302 = vld [vmem:[#allocation8 + $0x1c8] sm:$0xff]
    %v303 = vld [vmem:[#allocation8 + $0x1d0] sm:$0xff]
    %v304 = vld [vmem:[#allocation8 + $0x1d8] sm:$0xff]
    %v305 = vld [vmem:[#allocation8 + $0x1e0] sm:$0xff]
    %v306 = vld [vmem:[#allocation8 + $0x1e8] sm:$0xff]
    %v307 = vld [vmem:[#allocation8 + $0x1f0] sm:$0xff]
    %v308 = vld [vmem:[#allocation8 + $0x1f8] sm:$0xff]
    %v309 = vld [vmem:[#allocation8 + $0x200] sm:$0xff]
    %v310 = vld [vmem:[#allocation8 + $0x208] sm:$0xff]
    %v311 = vld [vmem:[#allocation8 + $0x210] sm:$0xff]
    %v312 = vld [vmem:[#allocation8 + $0x218] sm:$0xff]
    %v313 = vld [vmem:[#allocation8 + $0x220] sm:$0xff]
    %v314 = vld [vmem:[#allocation8 + $0x228] sm:$0xff]
    %v315 = vld [vmem:[#allocation8 + $0x230] sm:$0xff]
    %v316 = vld [vmem:[#allocation8 + $0x238] sm:$0xff]
    %v317 = vld [vmem:[#allocation8 + $0x240] sm:$0xff]
    %v318 = vld [vmem:[#allocation8 + $0x248] sm:$0xff]
    %v319 = vld [vmem:[#allocation8 + $0x250] sm:$0xff]
    %v320 = vld [vmem:[#allocation8 + $0x258] sm:$0xff]
    %v321 = vld [vmem:[#allocation8 + $0x260] sm:$0xff]
    %v322 = vld [vmem:[#allocation8 + $0x268] sm:$0xff]
    %v323 = vld [vmem:[#allocation8 + $0x270] sm:$0xff]
    %v324 = vld [vmem:[#allocation8 + $0x278] sm:$0xff]
    %v325 = vld [vmem:[#allocation8 + $0x280] sm:$0xff]
    %v326 = vld [vmem:[#allocation8 + $0x288] sm:$0xff]
    %v327 = vld [vmem:[#allocation8 + $0x290] sm:$0xff]
    %v328 = vld [vmem:[#allocation8 + $0x298] sm:$0xff]
    %v329 = vld [vmem:[#allocation8 + $0x2a0] sm:$0xff]
    %v330 = vld [vmem:[#allocation8 + $0x2a8] sm:$0xff]
    %v331 = vld [vmem:[#allocation8 + $0x2b0] sm:$0xff]
    %v332 = vld [vmem:[#allocation8 + $0x2b8] sm:$0xff]
    %v333 = vld [vmem:[#allocation8 + $0x2c0] sm:$0xff]
    %v334 = vld [vmem:[#allocation8 + $0x2c8] sm:$0xff]
    %v335 = vld [vmem:[#allocation8 + $0x2d0] sm:$0xff]
    %v336 = vld [vmem:[#allocation8 + $0x2d8] sm:$0xff]
    %v337 = vld [vmem:[#allocation8 + $0x2e0] sm:$0xff]
    %v338 = vld [vmem:[#allocation8 + $0x2e8] sm:$0xff]
    %v339 = vld [vmem:[#allocation8 + $0x2f0] sm:$0xff]
    %v340 = vld [vmem:[#allocation8 + $0x2f8] sm:$0xff]
    %v341 = vld [vmem:[#allocation8 + $0x300] sm:$0xff]
    %v342 = vld [vmem:[#allocation8 + $0x308] sm:$0xff]
    %v343 = vld [vmem:[#allocation8 + $0x310] sm:$0xff]
    %v344 = vld [vmem:[#allocation8 + $0x318] sm:$0xff]
    %v345 = vld [vmem:[#allocation8 + $0x320] sm:$0xff]
    %v346 = vld [vmem:[#allocation8 + $0x328] sm:$0xff]
    %v347 = vld [vmem:[#allocation8 + $0x330] sm:$0xff]
    %v348 = vld [vmem:[#allocation8 + $0x338] sm:$0xff]
    %v349 = vld [vmem:[#allocation8 + $0x340] sm:$0xff]
    %v350 = vld [vmem:[#allocation8 + $0x348] sm:$0xff]
    %v351 = vld [vmem:[#allocation8 + $0x350] sm:$0xff]
    %v352 = vld [vmem:[#allocation8 + $0x358] sm:$0xff]
    %v353 = vld [vmem:[#allocation8 + $0x360] sm:$0xff]
    %v354 = vld [vmem:[#allocation8 + $0x368] sm:$0xff]
    %v355 = vld [vmem:[#allocation8 + $0x370] sm:$0xff]
    %v356 = vld [vmem:[#allocation8 + $0x378] sm:$0xff]
    %v357 = vld [vmem:[#allocation8 + $0x380] sm:$0xff]
    %v358 = vld [vmem:[#allocation8 + $0x388] sm:$0xff]
    %v359 = vld [vmem:[#allocation8 + $0x390] sm:$0xff]
    %v360 = vld [vmem:[#allocation8 + $0x398] sm:$0xff]
    %v361 = vld [vmem:[#allocation8 + $0x3a0] sm:$0xff]
    %v362 = vld [vmem:[#allocation8 + $0x3a8] sm:$0xff]
    %v363 = vld [vmem:[#allocation8 + $0x3b0] sm:$0xff]
    %v364 = vld [vmem:[#allocation8 + $0x3b8] sm:$0xff]
    %v365 = vld [vmem:[#allocation8 + $0x3c0] sm:$0xff]
    %v366 = vld [vmem:[#allocation8 + $0x3c8] sm:$0xff]
    %v367 = vld [vmem:[#allocation8 + $0x3d0] sm:$0xff]
    %v368 = vld [vmem:[#allocation8 + $0x3d8] sm:$0xff]
    %v369 = vld [vmem:[#allocation8 + $0x3e0] sm:$0xff]
    %v370 = vld [vmem:[#allocation8 + $0x3e8] sm:$0xff]
    %v371 = vld [vmem:[#allocation8 + $0x3f0] sm:$0xff]
    %v372 = vld [vmem:[#allocation8 + $0x3f8] sm:$0xff]
    %v373 = vld [vmem:[%s4] sm:$0xf]
    %v375 = vlaneseq
    %v376 = vshrl.u32 %v375, 7
    %v377 = vsub.s32 0, %v376
    %v378 = vrot.slane %v373, %v377
    %v379 = vlaneseq
    %v380 = vshrl.u32 %v379, 7
    %v381 = vsub.s32 1, %v380
    %v382 = vrot.slane %v373, %v381
    %v383 = vlaneseq
    %v384 = vshrl.u32 %v383, 7
    %v385 = vsub.s32 2, %v384
    %v386 = vrot.slane %v373, %v385
    %v387 = vlaneseq
    %v388 = vshrl.u32 %v387, 7
    %v389 = vsub.s32 3, %v388
    %v390 = vrot.slane %v373, %v389
    %v523 = vunpack.c.l.b16 %v245
    %v524 = vunpack.c.h.b16 %v245
    %v525 = vunpack.c.l.b16 %v246
    %v526 = vunpack.c.h.b16 %v246
    %v527 = vunpack.c.l.b16 %v247
    %v528 = vunpack.c.h.b16 %v247
    %v529 = vunpack.c.l.b16 %v248
    %v530 = vunpack.c.h.b16 %v248
    %v531 = vunpack.c.l.b16 %v249
    %v532 = vunpack.c.h.b16 %v249
    %v533 = vunpack.c.l.b16 %v250
    %v534 = vunpack.c.h.b16 %v250
    %v535 = vunpack.c.l.b16 %v251
    %v536 = vunpack.c.h.b16 %v251
    %v537 = vunpack.c.l.b16 %v252
    %v538 = vunpack.c.h.b16 %v252
    %v539 = vunpack.c.l.b16 %v253
    %v540 = vunpack.c.h.b16 %v253
    %v541 = vunpack.c.l.b16 %v254
    %v542 = vunpack.c.h.b16 %v254
    %v543 = vunpack.c.l.b16 %v255
    %v544 = vunpack.c.h.b16 %v255
    %v545 = vunpack.c.l.b16 %v256
    %v546 = vunpack.c.h.b16 %v256
    %v547 = vunpack.c.l.b16 %v257
    %v548 = vunpack.c.h.b16 %v257
    %v549 = vunpack.c.l.b16 %v258
    %v550 = vunpack.c.h.b16 %v258
    %v551 = vunpack.c.l.b16 %v259
    %v552 = vunpack.c.h.b16 %v259
    %v553 = vunpack.c.l.b16 %v260
    %v554 = vunpack.c.h.b16 %v260
    %v555 = vunpack.c.l.b16 %v261
    %v556 = vunpack.c.h.b16 %v261
    %v557 = vunpack.c.l.b16 %v262
    %v558 = vunpack.c.h.b16 %v262
    %v559 = vunpack.c.l.b16 %v263
    %v560 = vunpack.c.h.b16 %v263
    %v561 = vunpack.c.l.b16 %v264
    %v562 = vunpack.c.h.b16 %v264
    %v563 = vunpack.c.l.b16 %v265
    %v564 = vunpack.c.h.b16 %v265
    %v565 = vunpack.c.l.b16 %v266
    %v566 = vunpack.c.h.b16 %v266
    %v567 = vunpack.c.l.b16 %v267
    %v568 = vunpack.c.h.b16 %v267
    %v569 = vunpack.c.l.b16 %v268
    %v570 = vunpack.c.h.b16 %v268
    %v571 = vunpack.c.l.b16 %v269
    %v572 = vunpack.c.h.b16 %v269
    %v573 = vunpack.c.l.b16 %v270
    %v574 = vunpack.c.h.b16 %v270
    %v575 = vunpack.c.l.b16 %v271
    %v576 = vunpack.c.h.b16 %v271
    %v577 = vunpack.c.l.b16 %v272
    %v578 = vunpack.c.h.b16 %v272
    %v579 = vunpack.c.l.b16 %v273
    %v580 = vunpack.c.h.b16 %v273
    %v581 = vunpack.c.l.b16 %v274
    %v582 = vunpack.c.h.b16 %v274
    %v583 = vunpack.c.l.b16 %v275
    %v584 = vunpack.c.h.b16 %v275
    %v585 = vunpack.c.l.b16 %v276
    %v586 = vunpack.c.h.b16 %v276
    %v587 = vunpack.c.l.b16 %v277
    %v588 = vunpack.c.h.b16 %v277
    %v589 = vunpack.c.l.b16 %v278
    %v590 = vunpack.c.h.b16 %v278
    %v591 = vunpack.c.l.b16 %v279
    %v592 = vunpack.c.h.b16 %v279
    %v593 = vunpack.c.l.b16 %v280
    %v594 = vunpack.c.h.b16 %v280
    %v595 = vunpack.c.l.b16 %v281
    %v596 = vunpack.c.h.b16 %v281
    %v597 = vunpack.c.l.b16 %v282
    %v598 = vunpack.c.h.b16 %v282
    %v599 = vunpack.c.l.b16 %v283
    %v600 = vunpack.c.h.b16 %v283
    %v601 = vunpack.c.l.b16 %v284
    %v602 = vunpack.c.h.b16 %v284
    %v603 = vunpack.c.l.b16 %v285
    %v604 = vunpack.c.h.b16 %v285
    %v605 = vunpack.c.l.b16 %v286
    %v606 = vunpack.c.h.b16 %v286
    %v607 = vunpack.c.l.b16 %v287
    %v608 = vunpack.c.h.b16 %v287
    %v609 = vunpack.c.l.b16 %v288
    %v610 = vunpack.c.h.b16 %v288
    %v611 = vunpack.c.l.b16 %v289
    %v612 = vunpack.c.h.b16 %v289
    %v613 = vunpack.c.l.b16 %v290
    %v614 = vunpack.c.h.b16 %v290
    %v615 = vunpack.c.l.b16 %v291
    %v616 = vunpack.c.h.b16 %v291
    %v617 = vunpack.c.l.b16 %v292
    %v618 = vunpack.c.h.b16 %v292
    %v619 = vunpack.c.l.b16 %v293
    %v620 = vunpack.c.h.b16 %v293
    %v621 = vunpack.c.l.b16 %v294
    %v622 = vunpack.c.h.b16 %v294
    %v623 = vunpack.c.l.b16 %v295
    %v624 = vunpack.c.h.b16 %v295
    %v625 = vunpack.c.l.b16 %v296
    %v626 = vunpack.c.h.b16 %v296
    %v627 = vunpack.c.l.b16 %v297
    %v628 = vunpack.c.h.b16 %v297
    %v629 = vunpack.c.l.b16 %v298
    %v630 = vunpack.c.h.b16 %v298
    %v631 = vunpack.c.l.b16 %v299
    %v632 = vunpack.c.h.b16 %v299
    %v633 = vunpack.c.l.b16 %v300
    %v634 = vunpack.c.h.b16 %v300
    %v635 = vunpack.c.l.b16 %v301
    %v636 = vunpack.c.h.b16 %v301
    %v637 = vunpack.c.l.b16 %v302
    %v638 = vunpack.c.h.b16 %v302
    %v639 = vunpack.c.l.b16 %v303
    %v640 = vunpack.c.h.b16 %v303
    %v641 = vunpack.c.l.b16 %v304
    %v642 = vunpack.c.h.b16 %v304
    %v643 = vunpack.c.l.b16 %v305
    %v644 = vunpack.c.h.b16 %v305
    %v645 = vunpack.c.l.b16 %v306
    %v646 = vunpack.c.h.b16 %v306
    %v647 = vunpack.c.l.b16 %v307
    %v648 = vunpack.c.h.b16 %v307
    %v649 = vunpack.c.l.b16 %v308
    %v650 = vunpack.c.h.b16 %v308
    %v651 = vunpack.c.l.b16 %v309
    %v652 = vunpack.c.h.b16 %v309
    %v653 = vunpack.c.l.b16 %v310
    %v654 = vunpack.c.h.b16 %v310
    %v655 = vunpack.c.l.b16 %v311
    %v656 = vunpack.c.h.b16 %v311
    %v657 = vunpack.c.l.b16 %v312
    %v658 = vunpack.c.h.b16 %v312
    %v659 = vunpack.c.l.b16 %v313
    %v660 = vunpack.c.h.b16 %v313
    %v661 = vunpack.c.l.b16 %v314
    %v662 = vunpack.c.h.b16 %v314
    %v663 = vunpack.c.l.b16 %v315
    %v664 = vunpack.c.h.b16 %v315
    %v665 = vunpack.c.l.b16 %v316
    %v666 = vunpack.c.h.b16 %v316
    %v667 = vunpack.c.l.b16 %v317
    %v668 = vunpack.c.h.b16 %v317
    %v669 = vunpack.c.l.b16 %v318
    %v670 = vunpack.c.h.b16 %v318
    %v671 = vunpack.c.l.b16 %v319
    %v672 = vunpack.c.h.b16 %v319
    %v673 = vunpack.c.l.b16 %v320
    %v674 = vunpack.c.h.b16 %v320
    %v675 = vunpack.c.l.b16 %v321
    %v676 = vunpack.c.h.b16 %v321
    %v677 = vunpack.c.l.b16 %v322
    %v678 = vunpack.c.h.b16 %v322
    %v679 = vunpack.c.l.b16 %v323
    %v680 = vunpack.c.h.b16 %v323
    %v681 = vunpack.c.l.b16 %v324
    %v682 = vunpack.c.h.b16 %v324
    %v683 = vunpack.c.l.b16 %v325
    %v684 = vunpack.c.h.b16 %v325
    %v685 = vunpack.c.l.b16 %v326
    %v686 = vunpack.c.h.b16 %v326
    %v687 = vunpack.c.l.b16 %v327
    %v688 = vunpack.c.h.b16 %v327
    %v689 = vunpack.c.l.b16 %v328
    %v690 = vunpack.c.h.b16 %v328
    %v691 = vunpack.c.l.b16 %v329
    %v692 = vunpack.c.h.b16 %v329
    %v693 = vunpack.c.l.b16 %v330
    %v694 = vunpack.c.h.b16 %v330
    %v695 = vunpack.c.l.b16 %v331
    %v696 = vunpack.c.h.b16 %v331
    %v697 = vunpack.c.l.b16 %v332
    %v698 = vunpack.c.h.b16 %v332
    %v699 = vunpack.c.l.b16 %v333
    %v700 = vunpack.c.h.b16 %v333
    %v701 = vunpack.c.l.b16 %v334
    %v702 = vunpack.c.h.b16 %v334
    %v703 = vunpack.c.l.b16 %v335
    %v704 = vunpack.c.h.b16 %v335
    %v705 = vunpack.c.l.b16 %v336
    %v706 = vunpack.c.h.b16 %v336
    %v707 = vunpack.c.l.b16 %v337
    %v708 = vunpack.c.h.b16 %v337
    %v709 = vunpack.c.l.b16 %v338
    %v710 = vunpack.c.h.b16 %v338
    %v711 = vunpack.c.l.b16 %v339
    %v712 = vunpack.c.h.b16 %v339
    %v713 = vunpack.c.l.b16 %v340
    %v714 = vunpack.c.h.b16 %v340
    %v715 = vunpack.c.l.b16 %v341
    %v716 = vunpack.c.h.b16 %v341
    %v717 = vunpack.c.l.b16 %v342
    %v718 = vunpack.c.h.b16 %v342
    %v719 = vunpack.c.l.b16 %v343
    %v720 = vunpack.c.h.b16 %v343
    %v721 = vunpack.c.l.b16 %v344
    %v722 = vunpack.c.h.b16 %v344
    %v723 = vunpack.c.l.b16 %v345
    %v724 = vunpack.c.h.b16 %v345
    %v725 = vunpack.c.l.b16 %v346
    %v726 = vunpack.c.h.b16 %v346
    %v727 = vunpack.c.l.b16 %v347
    %v728 = vunpack.c.h.b16 %v347
    %v729 = vunpack.c.l.b16 %v348
    %v730 = vunpack.c.h.b16 %v348
    %v731 = vunpack.c.l.b16 %v349
    %v732 = vunpack.c.h.b16 %v349
    %v733 = vunpack.c.l.b16 %v350
    %v734 = vunpack.c.h.b16 %v350
    %v735 = vunpack.c.l.b16 %v351
    %v736 = vunpack.c.h.b16 %v351
    %v737 = vunpack.c.l.b16 %v352
    %v738 = vunpack.c.h.b16 %v352
    %v739 = vunpack.c.l.b16 %v353
    %v740 = vunpack.c.h.b16 %v353
    %v741 = vunpack.c.l.b16 %v354
    %v742 = vunpack.c.h.b16 %v354
    %v743 = vunpack.c.l.b16 %v355
    %v744 = vunpack.c.h.b16 %v355
    %v745 = vunpack.c.l.b16 %v356
    %v746 = vunpack.c.h.b16 %v356
    %v747 = vunpack.c.l.b16 %v357
    %v748 = vunpack.c.h.b16 %v357
    %v749 = vunpack.c.l.b16 %v358
    %v750 = vunpack.c.h.b16 %v358
    %v751 = vunpack.c.l.b16 %v359
    %v752 = vunpack.c.h.b16 %v359
    %v753 = vunpack.c.l.b16 %v360
    %v754 = vunpack.c.h.b16 %v360
    %v755 = vunpack.c.l.b16 %v361
    %v756 = vunpack.c.h.b16 %v361
    %v757 = vunpack.c.l.b16 %v362
    %v758 = vunpack.c.h.b16 %v362
    %v759 = vunpack.c.l.b16 %v363
    %v760 = vunpack.c.h.b16 %v363
    %v761 = vunpack.c.l.b16 %v364
    %v762 = vunpack.c.h.b16 %v364
    %v763 = vunpack.c.l.b16 %v365
    %v764 = vunpack.c.h.b16 %v365
    %v765 = vunpack.c.l.b16 %v366
    %v766 = vunpack.c.h.b16 %v366
    %v767 = vunpack.c.l.b16 %v367
    %v768 = vunpack.c.h.b16 %v367
    %v769 = vunpack.c.l.b16 %v368
    %v770 = vunpack.c.h.b16 %v368
    %v771 = vunpack.c.l.b16 %v369
    %v772 = vunpack.c.h.b16 %v369
    %v773 = vunpack.c.l.b16 %v370
    %v774 = vunpack.c.h.b16 %v370
    %v775 = vunpack.c.l.b16 %v371
    %v776 = vunpack.c.h.b16 %v371
    %v777 = vunpack.c.l.b16 %v372
    %v778 = vunpack.c.h.b16 %v372
    %v779 = vpack.c.b16 %v527, %v523
    %v780 = vpack.c.b16 %v528, %v524
    %v781 = vpack.c.b16 %v529, %v525
    %v782 = vpack.c.b16 %v530, %v526
    %v783 = vpack.c.b16 %v535, %v531
    %v784 = vpack.c.b16 %v536, %v532
    %v785 = vpack.c.b16 %v537, %v533
    %v786 = vpack.c.b16 %v538, %v534
    %v787 = vpack.c.b16 %v543, %v539
    %v788 = vpack.c.b16 %v544, %v540
    %v789 = vpack.c.b16 %v545, %v541
    %v790 = vpack.c.b16 %v546, %v542
    %v791 = vpack.c.b16 %v551, %v547
    %v792 = vpack.c.b16 %v552, %v548
    %v793 = vpack.c.b16 %v553, %v549
    %v794 = vpack.c.b16 %v554, %v550
    %v795 = vpack.c.b16 %v559, %v555
    %v796 = vpack.c.b16 %v560, %v556
    %v797 = vpack.c.b16 %v561, %v557
    %v798 = vpack.c.b16 %v562, %v558
    %v799 = vpack.c.b16 %v567, %v563
    %v800 = vpack.c.b16 %v568, %v564
    %v801 = vpack.c.b16 %v569, %v565
    %v802 = vpack.c.b16 %v570, %v566
    %v803 = vpack.c.b16 %v575, %v571
    %v804 = vpack.c.b16 %v576, %v572
    %v805 = vpack.c.b16 %v577, %v573
    %v806 = vpack.c.b16 %v578, %v574
    %v807 = vpack.c.b16 %v583, %v579
    %v808 = vpack.c.b16 %v584, %v580
    %v809 = vpack.c.b16 %v585, %v581
    %v810 = vpack.c.b16 %v586, %v582
    %v811 = vpack.c.b16 %v591, %v587
    %v812 = vpack.c.b16 %v592, %v588
    %v813 = vpack.c.b16 %v593, %v589
    %v814 = vpack.c.b16 %v594, %v590
    %v815 = vpack.c.b16 %v599, %v595
    %v816 = vpack.c.b16 %v600, %v596
    %v817 = vpack.c.b16 %v601, %v597
    %v818 = vpack.c.b16 %v602, %v598
    %v819 = vpack.c.b16 %v607, %v603
    %v820 = vpack.c.b16 %v608, %v604
    %v821 = vpack.c.b16 %v609, %v605
    %v822 = vpack.c.b16 %v610, %v606
    %v823 = vpack.c.b16 %v615, %v611
    %v824 = vpack.c.b16 %v616, %v612
    %v825 = vpack.c.b16 %v617, %v613
    %v826 = vpack.c.b16 %v618, %v614
    %v827 = vpack.c.b16 %v623, %v619
    %v828 = vpack.c.b16 %v624, %v620
    %v829 = vpack.c.b16 %v625, %v621
    %v830 = vpack.c.b16 %v626, %v622
    %v831 = vpack.c.b16 %v631, %v627
    %v832 = vpack.c.b16 %v632, %v628
    %v833 = vpack.c.b16 %v633, %v629
    %v834 = vpack.c.b16 %v634, %v630
    %v835 = vpack.c.b16 %v639, %v635
    %v836 = vpack.c.b16 %v640, %v636
    %v837 = vpack.c.b16 %v641, %v637
    %v838 = vpack.c.b16 %v642, %v638
    %v839 = vpack.c.b16 %v647, %v643
    %v840 = vpack.c.b16 %v648, %v644
    %v841 = vpack.c.b16 %v649, %v645
    %v842 = vpack.c.b16 %v650, %v646
    %v843 = vpack.c.b16 %v655, %v651
    %v844 = vpack.c.b16 %v656, %v652
    %v845 = vpack.c.b16 %v657, %v653
    %v846 = vpack.c.b16 %v658, %v654
    %v847 = vpack.c.b16 %v663, %v659
    %v848 = vpack.c.b16 %v664, %v660
    %v849 = vpack.c.b16 %v665, %v661
    %v850 = vpack.c.b16 %v666, %v662
    %v851 = vpack.c.b16 %v671, %v667
    %v852 = vpack.c.b16 %v672, %v668
    %v853 = vpack.c.b16 %v673, %v669
    %v854 = vpack.c.b16 %v674, %v670
    %v855 = vpack.c.b16 %v679, %v675
    %v856 = vpack.c.b16 %v680, %v676
    %v857 = vpack.c.b16 %v681, %v677
    %v858 = vpack.c.b16 %v682, %v678
    %v859 = vpack.c.b16 %v687, %v683
    %v860 = vpack.c.b16 %v688, %v684
    %v861 = vpack.c.b16 %v689, %v685
    %v862 = vpack.c.b16 %v690, %v686
    %v863 = vpack.c.b16 %v695, %v691
    %v864 = vpack.c.b16 %v696, %v692
    %v865 = vpack.c.b16 %v697, %v693
    %v866 = vpack.c.b16 %v698, %v694
    %v867 = vpack.c.b16 %v703, %v699
    %v868 = vpack.c.b16 %v704, %v700
    %v869 = vpack.c.b16 %v705, %v701
    %v870 = vpack.c.b16 %v706, %v702
    %v871 = vpack.c.b16 %v711, %v707
    %v872 = vpack.c.b16 %v712, %v708
    %v873 = vpack.c.b16 %v713, %v709
    %v874 = vpack.c.b16 %v714, %v710
    %v875 = vpack.c.b16 %v719, %v715
    %v876 = vpack.c.b16 %v720, %v716
    %v877 = vpack.c.b16 %v721, %v717
    %v878 = vpack.c.b16 %v722, %v718
    %v879 = vpack.c.b16 %v727, %v723
    %v880 = vpack.c.b16 %v728, %v724
    %v881 = vpack.c.b16 %v729, %v725
    %v882 = vpack.c.b16 %v730, %v726
    %v883 = vpack.c.b16 %v735, %v731
    %v884 = vpack.c.b16 %v736, %v732
    %v885 = vpack.c.b16 %v737, %v733
    %v886 = vpack.c.b16 %v738, %v734
    %v887 = vpack.c.b16 %v743, %v739
    %v888 = vpack.c.b16 %v744, %v740
    %v889 = vpack.c.b16 %v745, %v741
    %v890 = vpack.c.b16 %v746, %v742
    %v891 = vpack.c.b16 %v751, %v747
    %v892 = vpack.c.b16 %v752, %v748
    %v893 = vpack.c.b16 %v753, %v749
    %v894 = vpack.c.b16 %v754, %v750
    %v895 = vpack.c.b16 %v759, %v755
    %v896 = vpack.c.b16 %v760, %v756
    %v897 = vpack.c.b16 %v761, %v757
    %v898 = vpack.c.b16 %v762, %v758
    %v899 = vpack.c.b16 %v767, %v763
    %v900 = vpack.c.b16 %v768, %v764
    %v901 = vpack.c.b16 %v769, %v765
    %v902 = vpack.c.b16 %v770, %v766
    %v903 = vpack.c.b16 %v775, %v771
    %v904 = vpack.c.b16 %v776, %v772
    %v905 = vpack.c.b16 %v777, %v773
    %v906 = vpack.c.b16 %v778, %v774
    %1035 = vmatprep.subr.bf16.mxu0 %v808
    %1036 = vmatpush1.bf16.msra.mxu0 %v807
    %1037 = vmatprep.subr.bf16.mxu0 %v804
    %1038 = vmatpush1.bf16.msra.mxu0 %v803
    %1039 = vmatprep.subr.bf16.mxu0 %v800
    %1040 = vmatpush1.bf16.msra.mxu0 %v799
    %1041 = vmatprep.subr.bf16.mxu0 %v796
    %1042 = vmatpush1.bf16.msra.mxu0 %v795
    %1043 = vmatprep.subr.bf16.mxu0 %v792
    %1044 = vmatpush1.bf16.msra.mxu0 %v791
    %1045 = vmatprep.subr.bf16.mxu0 %v788
    %1046 = vmatpush1.bf16.msra.mxu0 %v787
    %1047 = vmatprep.subr.bf16.mxu0 %v784
    %1048 = vmatpush1.bf16.msra.mxu0 %v783
    %1049 = vmatprep.subr.bf16.mxu0 %v780
    %1050 = vmatpush1.bf16.msra.mxu0 %v779
    %1051 = vmatprep.subr.bf16.mxu0 %v840
    %1052 = vmatpush2.bf16.msra.mxu0 %v839
    %1053 = vmatprep.subr.bf16.mxu0 %v836
    %1054 = vmatpush2.bf16.msra.mxu0 %v835
    %1055 = vmatprep.subr.bf16.mxu0 %v832
    %1056 = vmatpush2.bf16.msra.mxu0 %v831
    %1057 = vmatprep.subr.bf16.mxu0 %v828
    %1058 = vmatpush2.bf16.msra.mxu0 %v827
    %1059 = vmatprep.subr.bf16.mxu0 %v824
    %1060 = vmatpush2.bf16.msra.mxu0 %v823
    %1061 = vmatprep.subr.bf16.mxu0 %v820
    %1062 = vmatpush2.bf16.msra.mxu0 %v819
    %1063 = vmatprep.subr.bf16.mxu0 %v816
    %1064 = vmatpush2.bf16.msra.mxu0 %v815
    %1065 = vmatprep.subr.bf16.mxu0 %v812
    %1066 = vmatpush2.bf16.msra.mxu0 %v811
    %1067 = vmatprep.mubr.bf16.mxu0 %v242
    %1068 = vmatmul.mubr.bf16.gmra.mxu0 %v241
    %v1069 = vpop.f32.mrf.mxu0
    %v1070 = vadd.f32 %v378, %v1069
    %v1071 = vpop.f32.mrf.mxu0
    %v1072 = vadd.f32 %v382, %v1071
    %v1073 = vpop.f32.mrf.mxu0
    %v1074 = vpop.f32.mrf.mxu0
    %1075 = vdwg.mxu0
    %1076 = vmatprep.subr.bf16.mxu0 %v872
    %1077 = vmatpush1.bf16.msra.mxu0 %v871
    %1078 = vmatprep.subr.bf16.mxu0 %v868
    %1079 = vmatpush1.bf16.msra.mxu0 %v867
    %1080 = vmatprep.subr.bf16.mxu0 %v864
    %1081 = vmatpush1.bf16.msra.mxu0 %v863
    %1082 = vmatprep.subr.bf16.mxu0 %v860
    %1083 = vmatpush1.bf16.msra.mxu0 %v859
    %1084 = vmatprep.subr.bf16.mxu0 %v856
    %1085 = vmatpush1.bf16.msra.mxu0 %v855
    %1086 = vmatprep.subr.bf16.mxu0 %v852
    %1087 = vmatpush1.bf16.msra.mxu0 %v851
    %1088 = vmatprep.subr.bf16.mxu0 %v848
    %1089 = vmatpush1.bf16.msra.mxu0 %v847
    %1090 = vmatprep.subr.bf16.mxu0 %v844
    %1091 = vmatpush1.bf16.msra.mxu0 %v843
    %1092 = vmatprep.subr.bf16.mxu0 %v904
    %1093 = vmatpush2.bf16.msra.mxu0 %v903
    %1094 = vmatprep.subr.bf16.mxu0 %v900
    %1095 = vmatpush2.bf16.msra.mxu0 %v899
    %1096 = vmatprep.subr.bf16.mxu0 %v896
    %1097 = vmatpush2.bf16.msra.mxu0 %v895
    %1098 = vmatprep.subr.bf16.mxu0 %v892
    %1099 = vmatpush2.bf16.msra.mxu0 %v891
    %1100 = vmatprep.subr.bf16.mxu0 %v888
    %1101 = vmatpush2.bf16.msra.mxu0 %v887
    %1102 = vmatprep.subr.bf16.mxu0 %v884
    %1103 = vmatpush2.bf16.msra.mxu0 %v883
    %1104 = vmatprep.subr.bf16.mxu0 %v880
    %1105 = vmatpush2.bf16.msra.mxu0 %v879
    %1106 = vmatprep.subr.bf16.mxu0 %v876
    %1107 = vmatpush2.bf16.msra.mxu0 %v875
    %1108 = vmatprep.mubr.bf16.mxu0 %v244
    %1109 = vmatmul.mubr.bf16.gmra.mxu0 %v243
    %v1110 = vpop.f32.mrf.mxu0
    %v1111 = vadd.f32 %v1070, %v1110
    %v1112 = vpop.f32.mrf.mxu0
    %v1113 = vadd.f32 %v1072, %v1112
    %v1114 = vpop.f32.mrf.mxu0
    %v1115 = vpop.f32.mrf.mxu0
    %1116 = vdwg.mxu0
    %1117 = vmatprep.subr.bf16.mxu0 %v810
    %1118 = vmatpush1.bf16.msra.mxu0 %v809
    %1119 = vmatprep.subr.bf16.mxu0 %v806
    %1120 = vmatpush1.bf16.msra.mxu0 %v805
    %1121 = vmatprep.subr.bf16.mxu0 %v802
    %1122 = vmatpush1.bf16.msra.mxu0 %v801
    %1123 = vmatprep.subr.bf16.mxu0 %v798
    %1124 = vmatpush1.bf16.msra.mxu0 %v797
    %1125 = vmatprep.subr.bf16.mxu0 %v794
    %1126 = vmatpush1.bf16.msra.mxu0 %v793
    %1127 = vmatprep.subr.bf16.mxu0 %v790
    %1128 = vmatpush1.bf16.msra.mxu0 %v789
    %1129 = vmatprep.subr.bf16.mxu0 %v786
    %1130 = vmatpush1.bf16.msra.mxu0 %v785
    %1131 = vmatprep.subr.bf16.mxu0 %v782
    %1132 = vmatpush1.bf16.msra.mxu0 %v781
    %1133 = vmatprep.subr.bf16.mxu0 %v842
    %1134 = vmatpush2.bf16.msra.mxu0 %v841
    %1135 = vmatprep.subr.bf16.mxu0 %v838
    %1136 = vmatpush2.bf16.msra.mxu0 %v837
    %1137 = vmatprep.subr.bf16.mxu0 %v834
    %1138 = vmatpush2.bf16.msra.mxu0 %v833
    %1139 = vmatprep.subr.bf16.mxu0 %v830
    %1140 = vmatpush2.bf16.msra.mxu0 %v829
    %1141 = vmatprep.subr.bf16.mxu0 %v826
    %1142 = vmatpush2.bf16.msra.mxu0 %v825
    %1143 = vmatprep.subr.bf16.mxu0 %v822
    %1144 = vmatpush2.bf16.msra.mxu0 %v821
    %1145 = vmatprep.subr.bf16.mxu0 %v818
    %1146 = vmatpush2.bf16.msra.mxu0 %v817
    %1147 = vmatprep.subr.bf16.mxu0 %v814
    %1148 = vmatpush2.bf16.msra.mxu0 %v813
    %1149 = vmatprep.mubr.bf16.mxu0 %v242
    %1150 = vmatmul.mubr.bf16.gmra.mxu0 %v241
    %v1151 = vpop.f32.mrf.mxu0
    %v1152 = vadd.f32 %v386, %v1151
    %v1153 = vpop.f32.mrf.mxu0
    %v1154 = vadd.f32 %v390, %v1153
    %v1155 = vpop.f32.mrf.mxu0
    %v1156 = vpop.f32.mrf.mxu0
    %1157 = vdwg.mxu0
    %1158 = vmatprep.subr.bf16.mxu0 %v874
    %1159 = vmatpush1.bf16.msra.mxu0 %v873
    %1160 = vmatprep.subr.bf16.mxu0 %v870
    %1161 = vmatpush1.bf16.msra.mxu0 %v869
    %1162 = vmatprep.subr.bf16.mxu0 %v866
    %1163 = vmatpush1.bf16.msra.mxu0 %v865
    %1164 = vmatprep.subr.bf16.mxu0 %v862
    %1165 = vmatpush1.bf16.msra.mxu0 %v861
    %1166 = vmatprep.subr.bf16.mxu0 %v858
    %1167 = vmatpush1.bf16.msra.mxu0 %v857
    %1168 = vmatprep.subr.bf16.mxu0 %v854
    %1169 = vmatpush1.bf16.msra.mxu0 %v853
    %1170 = vmatprep.subr.bf16.mxu0 %v850
    %1171 = vmatpush1.bf16.msra.mxu0 %v849
    %1172 = vmatprep.subr.bf16.mxu0 %v846
    %1173 = vmatpush1.bf16.msra.mxu0 %v845
    %1174 = vmatprep.subr.bf16.mxu0 %v906
    %1175 = vmatpush2.bf16.msra.mxu0 %v905
    %1176 = vmatprep.subr.bf16.mxu0 %v902
    %1177 = vmatpush2.bf16.msra.mxu0 %v901
    %1178 = vmatprep.subr.bf16.mxu0 %v898
    %1179 = vmatpush2.bf16.msra.mxu0 %v897
    %1180 = vmatprep.subr.bf16.mxu0 %v894
    %1181 = vmatpush2.bf16.msra.mxu0 %v893
    %1182 = vmatprep.subr.bf16.mxu0 %v890
    %1183 = vmatpush2.bf16.msra.mxu0 %v889
    %1184 = vmatprep.subr.bf16.mxu0 %v886
    %1185 = vmatpush2.bf16.msra.mxu0 %v885
    %1186 = vmatprep.subr.bf16.mxu0 %v882
    %1187 = vmatpush2.bf16.msra.mxu0 %v881
    %1188 = vmatprep.subr.bf16.mxu0 %v878
    %1189 = vmatpush2.bf16.msra.mxu0 %v877
    %1190 = vmatprep.mubr.bf16.mxu0 %v244
    %1191 = vmatmul.mubr.bf16.gmra.mxu0 %v243
    %v1192 = vpop.f32.mrf.mxu0
    %v1193 = vadd.f32 %v1152, %v1192
    %v1194 = vpop.f32.mrf.mxu0
    %v1195 = vadd.f32 %v1154, %v1194
    %v1196 = vpop.f32.mrf.mxu0
    %v1197 = vpop.f32.mrf.mxu0
    %1198 = vdwg.mxu0
    %v1199 = vmax.f32 %v1111, 0.0
    %v1200 = vmax.f32 %v1113, 0.0
    %v1201 = vmax.f32 %v1193, 0.0
    %v1202 = vmax.f32 %v1195, 0.0
    %v1203 = vld [vmem:[%s5] sm:$0xf]
    %v1205 = vlaneseq
    %v1206 = vshrl.u32 %v1205, 7
    %v1207 = vsub.s32 0, %v1206
    %v1208 = vrot.slane %v1203, %v1207
    %v1209 = vlaneseq
    %v1210 = vshrl.u32 %v1209, 7
    %v1211 = vsub.s32 1, %v1210
    %v1212 = vrot.slane %v1203, %v1211
    %v1213 = vlaneseq
    %v1214 = vshrl.u32 %v1213, 7
    %v1215 = vsub.s32 2, %v1214
    %v1216 = vrot.slane %v1203, %v1215
    %v1217 = vlaneseq
    %v1218 = vshrl.u32 %v1217, 7
    %v1219 = vsub.s32 3, %v1218
    %v1220 = vrot.slane %v1203, %v1219
    %v1225 = vmul.f32 %v1199, %v1208
    %v1226 = vmul.f32 %v1200, %v1212
    %v1227 = vmul.f32 %v1201, %v1216
    %v1228 = vmul.f32 %v1202, %v1220
    %v1229 = vadd.f32 %v1225, %v1226
    %v1230 = vadd.f32 %v1229, %v1227
    %v1231 = vadd.f32 %v1230, %v1228
    %1232 = vadd.xlane.f32.xlu0 %v1231
    %v1233 = vpop.xlane.xlu0 %1232
    %s1234 = sld [smem:[#allocation2]]
    %v1235 = vstv %s1234
    %v1236 = vadd.f32 %v1233, %v1235
    %v1237 = vmax.f32 %v1236, -50.0
    %v1238 = vmin.f32 %v1237, 50.0
    %vm1239 = vcmask 7168
    %1240 = vst.msk [vmem:[%s7] sm:$0xff] %vm1239, %v1238
    // Predicated region
    $region46: #{discriminator_forward.1} parent=1 // pred_check
      _
    $region47: #{discriminator_forward.1} parent=1 // pred_check_branch
      %1242 = sbr.rel (0) target = $region49
    $region48: #{discriminator_forward.1} parent=1 // pred_region
      _
    $region49: #{discriminator_forward.1} parent=1 // pred_fallthru
      _
    // Predicated region
    $region50: #{discriminator_forward.1} parent=1 // pred_check
      _
    $region51: #{discriminator_forward.1} parent=1 // pred_check_branch
      %1244 = sbr.rel (0) target = $region53
    $region52: #{discriminator_forward.1} parent=1 // pred_region
      _
    $region53: #{discriminator_forward.1} parent=1 // pred_fallthru
      _
    %1245 = vsyncpa [#allocation4], 1
    %1246 = vsyncpa [#allocation6], 1
    %1247 = vsyncpa [#allocation9], 1

</llo_original>
